<compile_context>
chip_gen: v7x
topology: tpu7x:2x2x1
jax: 0.10.0
libtpu: 0.0.40
codegen_flags: <defaults>
</compile_context>

<pallas_src>
import jax
import jax.numpy as jnp
from jax.experimental import pallas as pl
from jax.experimental.pallas import tpu as pltpu

F32 = jnp.float32
RRELU_SLOPE = (1.0 / 8.0 + 1.0 / 3.0) / 2.0   # F.rrelu eval-mode negative slope
BN_EPS = 1e-5


def _round_up(x, m):
    return ((x + m - 1) // m) * m


# ----------------------------------------------------------------------------
# Fused Pallas kernel (one batch tile per grid step)
# ----------------------------------------------------------------------------
def _make_fused_kernel(ks, lp, slope):
    def kernel(sp_ref, dvh_ref, cln_ref, w1_ref, b1_ref,
               w2_ref, b2_ref, w3_ref, o_ref):
        # --- Conv1d(1,1,ks) + BatchNorm1d(1) folded: ks-tap scalar MAC (VPU).
        #     Tap k reads x[j+k] via an XLU lane rotation of the resident tile
        #     (roll by lp-k == roll by -k); wrapped lanes only hit rows that the
        #     folded fc1 weight zeroes, so they contribute nothing.
        x = dvh_ref[...]                                            # (tb, lp)
        acc = sp_ref[0] * x
        for k in range(1, ks):
            acc = acc + sp_ref[k] * pltpu.roll(x, shift=lp - k, axis=1)
        h = acc + sp_ref[ks]
        h = jnp.where(h >= 0.0, h, slope * h)                       # RReLU (eval)

        # --- AvgPool1d + Flatten + fc1 + fc1_bn folded into one matmul.
        z1 = jnp.dot(h, w1_ref[...], preferred_element_type=jnp.float32) + b1_ref[...]
        z1 = jnp.maximum(z1, 0.0)                                   # ReLU

        # --- concat([z1, x_cln]) in vregs + fc2 (+ fc2_bn) as ONE MXU dot.
        zc = jnp.concatenate([z1, cln_ref[...]], axis=1)            # (tb, 2n)
        z2 = jnp.dot(zc, w2_ref[...], preferred_element_type=jnp.float32) + b2_ref[...]
        z2 = jnp.where(z2 >= 0.0, z2, slope * z2)                   # RReLU (eval)

        # --- fc3 (+ fc3_bn): transposed-RHS dot -> (1, tb), lane-dense store.
        z3 = jax.lax.dot_general(
            w3_ref[...], z2, (((1,), (1,)), ((), ())),
            preferred_element_type=jnp.float32) + sp_ref[ks + 1]
        o_ref[...] = jax.nn.sigmoid(z3)                             # (1, tb)

    return kernel


# ----------------------------------------------------------------------------
# Wrapper: parameter folding (BN eval / pool / concat-stack) + pallas_call
# ----------------------------------------------------------------------------
def radiomics_forward(params, x_dvh, x_cln, *, pool):
    """Eval-mode forward. x_dvh: (N, 1, L), x_cln: (N, 1, n_cln) -> (N,)."""
    n, _, length = x_dvh.shape
    n_cln = x_cln.shape[-1]
    ks = params["conv1_w"].shape[-1]
    assert ks <= 128
    lc = length - ks + 1
    o_len = (lc - pool) // pool + 1

    lp = _round_up(length, 128)        # lane width of the DVH tile
    # Roll-based conv validity: wrapped lanes only reach rows >= lp-(ks-1),
    # and every such row is a zero row of w1_fold (j >= o_len*pool).
    assert o_len * pool <= lp - (ks - 1)

    def bn_scale_bias(bn):
        gamma, beta, mean, var = bn
        s = gamma / jnp.sqrt(var + BN_EPS)
        return s, beta - mean * s

    # Conv1d + BatchNorm1d(1) folded into per-tap weights + one scalar bias.
    s_c, t_c = bn_scale_bias(params["conv1_bn"])
    taps = (s_c[0] * params["conv1_w"].reshape(ks)).astype(F32)           # (ks,)
    conv_bias = s_c[0] * params["conv1_b"][0] + t_c[0]

    # AvgPool + Flatten + fc1 + fc1_bn folded into one (Lp, n_cln) matrix.
    s1, t1 = bn_scale_bias(params["fc1_bn"])
    w1_eff = params["fc1_w"].T * s1[None, :]                              # (O, n_cln)
    j = jnp.arange(lp)
    pool_mat = (jax.nn.one_hot(j // pool, o_len, dtype=F32) / pool) \
        * (j < o_len * pool).astype(F32)[:, None]                         # (Lp, O)
    w1_fold = (pool_mat @ w1_eff).astype(F32)                             # (Lp, n_cln)
    b1_fold = (s1 * params["fc1_b"] + t1).reshape(1, n_cln).astype(F32)

    # fc2 + fc2_bn stacked for the in-kernel concat [z1 | x_cln].
    s2, t2 = bn_scale_bias(params["fc2_bn"])
    w2_fold = (params["fc2_w"] * s2[:, None]).T.astype(F32)               # (2n, 2n)
    b2_fold = (s2 * params["fc2_b"] + t2).reshape(1, 2 * n_cln).astype(F32)

    # fc3 + fc3_bn (single output feature).
    s3, t3 = bn_scale_bias(params["fc3_bn"])
    w3_row = (s3[0] * params["fc3_w"]).reshape(1, 2 * n_cln).astype(F32)
    b3_fold = s3[0] * params["fc3_b"][0] + t3[0]

    sparams = jnp.concatenate([taps, conv_bias[None], b3_fold[None]]).astype(F32)

    # Batch tiling: up to 256 to fill the 256-wide MXU; multiple of 8 sublanes.
    if n >= 256:
        tb = 256
    elif n >= 128:
        tb = 128
    else:
        tb = _round_up(n, 8)
    n_pad = _round_up(n, tb)

    dvh = x_dvh[:, 0, :].astype(F32)
    cln = x_cln[:, 0, :].astype(F32)
    if n_pad != n or lp != length:     # only pad when actually required
        dvh = jnp.pad(dvh, ((0, n_pad - n), (0, lp - length)))
    if n_pad != n:
        cln = jnp.pad(cln, ((0, n_pad - n), (0, 0)))

    # Cost hint + (only if needed) a raised scoped-VMEM budget for large L.
    two_n = 2 * n_cln
    flops = n_pad * (2 * ks * lp + 2 * lp * n_cln + 2 * two_n * two_n + 2 * two_n)
    bytes_accessed = 4 * (n_pad * lp + n_pad * n_cln + lp * n_cln
                          + two_n * two_n + 3 * two_n + n_pad)
    cost = pl.CostEstimate(flops=flops, transcendentals=n_pad,
                           bytes_accessed=bytes_accessed)
    vmem_need = 4 * (2 * tb * lp + 2 * tb * n_cln + lp * n_cln
                     + two_n * two_n + 4 * two_n + 2 * tb) + (2 << 20)
    compiler_params = pltpu.CompilerParams(
        dimension_semantics=("parallel",),
        vmem_limit_bytes=vmem_need if vmem_need > (16 << 20) else None,
    )

    kernel = _make_fused_kernel(ks, lp, RRELU_SLOPE)
    out = pl.pallas_call(
        kernel,
        out_shape=jax.ShapeDtypeStruct((1, n_pad), F32),          # lane-dense output
        grid=(n_pad // tb,),
        in_specs=[
            pl.BlockSpec(memory_space=pltpu.MemorySpace.SMEM),    # folded scalars
            pl.BlockSpec((tb, lp), lambda b: (b, 0)),             # DVH batch tile
            pl.BlockSpec((tb, n_cln), lambda b: (b, 0)),          # clinical tile
            pl.BlockSpec((lp, n_cln), lambda b: (0, 0)),          # w1 (resident)
            pl.BlockSpec((1, n_cln), lambda b: (0, 0)),
            pl.BlockSpec((two_n, two_n), lambda b: (0, 0)),       # stacked fc2
            pl.BlockSpec((1, two_n), lambda b: (0, 0)),
            pl.BlockSpec((1, two_n), lambda b: (0, 0)),
        ],
        out_specs=pl.BlockSpec((1, tb), lambda b: (0, b)),
        compiler_params=compiler_params,
        cost_estimate=cost,
    )(sparams, dvh, cln, w1_fold, b1_fold, w2_fold, b2_fold, w3_row)

    return out[0, :n]          # matches x_fin.squeeze() for N > 1


# ----------------------------------------------------------------------------
# Pure-JAX reference (unfused, mirrors the PyTorch forward in eval mode)
# ----------------------------------------------------------------------------
def reference_forward(params, x_dvh, x_cln, pool, eps=BN_EPS):
    n, _, length = x_dvh.shape
    ks = params["conv1_w"].shape[-1]
    lc = length - ks + 1
    x = x_dvh[:, 0, :]
    w = params["conv1_w"].reshape(ks)
    conv = jnp.stack([x[:, k:k + lc] for k in range(ks)], axis=-1) @ w \
        + params["conv1_b"][0]
    g, b, m, v = params["conv1_bn"]
    h = (conv - m[0]) / jnp.sqrt(v[0] + eps) * g[0] + b[0]
    h = jnp.where(h >= 0, h, RRELU_SLOPE * h)
    o_len = (lc - pool) // pool + 1
    pooled = h[:, :o_len * pool].reshape(n, o_len, pool).mean(-1)
    z = pooled @ params["fc1_w"].T + params["fc1_b"]
    g, b, m, v = params["fc1_bn"]
    z = jnp.maximum((z - m) / jnp.sqrt(v + eps) * g + b, 0.0)
    zf = jnp.concatenate([z, x_cln[:, 0, :]], axis=1)
    z2 = zf @ params["fc2_w"].T + params["fc2_b"]
    g, b, m, v = params["fc2_bn"]
    z2 = (z2 - m) / jnp.sqrt(v + eps) * g + b
    z2 = jnp.where(z2 >= 0, z2, RRELU_SLOPE * z2)
    z3 = z2 @ params["fc3_w"].T + params["fc3_b"]
    g, b, m, v = params["fc3_bn"]
    z3 = (z3 - m) / jnp.sqrt(v + eps) * g + b
    return jax.nn.sigmoid(z3)[:, 0]


# ----------------------------------------------------------------------------
# Deterministic parameter construction (shapes mirror the PyTorch module)
# ----------------------------------------------------------------------------
def init_params(key, ks, o_len, n_cln):
    keys = iter(jax.random.split(key, 32))

    def bn(c):
        gamma = 1.0 + 0.1 * jax.random.normal(next(keys), (c,), F32)
        beta = 0.1 * jax.random.normal(next(keys), (c,), F32)
        rmean = 0.1 * jax.random.normal(next(keys), (c,), F32)
        rvar = 1.0 + 0.1 * jnp.abs(jax.random.normal(next(keys), (c,), F32))
        return (gamma, beta, rmean, rvar)

    def linear(fan_in, fan_out):
        w = jax.random.normal(next(keys), (fan_out, fan_in), F32) / jnp.sqrt(float(fan_in))
        b = 0.1 * jax.random.normal(next(keys), (fan_out,), F32)
        return w, b

    conv_w = jax.random.normal(next(keys), (1, 1, ks), F32) / jnp.sqrt(float(ks))
    conv_b = 0.1 * jax.random.normal(next(keys), (1,), F32)
    fc1_w, fc1_b = linear(o_len, n_cln)
    fc2_w, fc2_b = linear(2 * n_cln, 2 * n_cln)
    fc3_w, fc3_b = linear(2 * n_cln, 1)
    return {
        "conv1_w": conv_w, "conv1_b": conv_b, "conv1_bn": bn(1),
        "fc1_w": fc1_w, "fc1_b": fc1_b, "fc1_bn": bn(n_cln),
        "fc2_w": fc2_w, "fc2_b": fc2_b, "fc2_bn": bn(2 * n_cln),
        "fc3_w": fc3_w, "fc3_b": fc3_b, "fc3_bn": bn(1),
    }


if __name__ == "__main__":
    KS, POOL, L, N_CLN, N = 5, 4, 128, 16, 8
    LC = L - KS + 1                      # 124
    O_LEN = (LC - POOL) // POOL + 1      # 31

    key = jax.random.PRNGKey(0)
    pkey, kdvh, kcln = jax.random.split(key, 3)
    params = init_params(pkey, KS, O_LEN, N_CLN)
    x_dvh = jax.random.normal(kdvh, (N, 1, L), F32)
    x_cln = jax.random.normal(kcln, (N, 1, N_CLN), F32)

    fwd = jax.jit(radiomics_forward, static_argnames=("pool",))
    out = jax.block_until_ready(fwd(params, x_dvh, x_cln, pool=POOL))

    ref = reference_forward(params, x_dvh, x_cln, POOL)
    assert out.shape == (N,), out.shape
    assert bool(jnp.all(jnp.isfinite(out)))
    assert bool(jnp.all((out >= 0.0) & (out <= 1.0)))
    assert jnp.allclose(out, ref, rtol=1e-4, atol=1e-4), (out, ref)
    print("KERNEL_OK")
</pallas_src>

<mosaic_0001>
module attributes {stable_mosaic.version = 11 : i64} {
  func.func @kernel(%arg0: i32, %arg1: memref<7xf32, #tpu.memory_space<smem>>, %arg2: memref<8x128xf32, #tpu.memory_space<vmem>>, %arg3: memref<8x16xf32, #tpu.memory_space<vmem>>, %arg4: memref<128x16xf32, #tpu.memory_space<vmem>>, %arg5: memref<1x16xf32, #tpu.memory_space<vmem>>, %arg6: memref<32x32xf32, #tpu.memory_space<vmem>>, %arg7: memref<1x32xf32, #tpu.memory_space<vmem>>, %arg8: memref<1x32xf32, #tpu.memory_space<vmem>>, %arg9: memref<1x8xf32, #tpu.memory_space<vmem>>) attributes {dimension_semantics = [#tpu.dimension_semantics<parallel>], iteration_bounds = array<i64: 1>, scalar_prefetch = 0 : i64, scratch_operands = 0 : i64, tpu.core_type = #tpu.core_type<tc>, window_params = [{transform_indices = @transform_0, window_bounds = array<i64: 7>}, {transform_indices = @transform_1, window_bounds = array<i64: 8, 128>}, {transform_indices = @transform_2, window_bounds = array<i64: 8, 16>}, {pipeline_mode = #tpu.pipeline_mode<synchronous>, transform_indices = @transform_3, window_bounds = array<i64: 128, 16>}, {pipeline_mode = #tpu.pipeline_mode<synchronous>, transform_indices = @transform_4, window_bounds = array<i64: 1, 16>}, {pipeline_mode = #tpu.pipeline_mode<synchronous>, transform_indices = @transform_5, window_bounds = array<i64: 32, 32>}, {pipeline_mode = #tpu.pipeline_mode<synchronous>, transform_indices = @transform_6, window_bounds = array<i64: 1, 32>}, {pipeline_mode = #tpu.pipeline_mode<synchronous>, transform_indices = @transform_7, window_bounds = array<i64: 1, 32>}, {transform_indices = @transform_8, window_bounds = array<i64: 1, 8>}]} {
    %c0 = arith.constant 0 : index
    %c0_0 = arith.constant 0 : index
    %0 = vector.load %arg2[%c0, %c0_0] : memref<8x128xf32, #tpu.memory_space<vmem>>, vector<8x128xf32>
    %c0_1 = arith.constant 0 : index
    %1 = memref.load %arg1[%c0_1] : memref<7xf32, #tpu.memory_space<smem>>
    %2 = vector.broadcast %1 : f32 to vector<8x128xf32>
    %3 = arith.mulf %2, %0 : vector<8x128xf32>
    %c1 = arith.constant 1 : index
    %4 = memref.load %arg1[%c1] : memref<7xf32, #tpu.memory_space<smem>>
    %c127_i32 = arith.constant 127 : i32
    %5 = tpu.dynamic_rotate %0 by %c127_i32 dim 1 : vector<8x128xf32>, i32 -> vector<8x128xf32>
    %6 = vector.broadcast %4 : f32 to vector<8x128xf32>
    %7 = arith.mulf %6, %5 : vector<8x128xf32>
    %8 = arith.addf %3, %7 : vector<8x128xf32>
    %c2 = arith.constant 2 : index
    %9 = memref.load %arg1[%c2] : memref<7xf32, #tpu.memory_space<smem>>
    %c126_i32 = arith.constant 126 : i32
    %10 = tpu.dynamic_rotate %0 by %c126_i32 dim 1 : vector<8x128xf32>, i32 -> vector<8x128xf32>
    %11 = vector.broadcast %9 : f32 to vector<8x128xf32>
    %12 = arith.mulf %11, %10 : vector<8x128xf32>
    %13 = arith.addf %8, %12 : vector<8x128xf32>
    %c3 = arith.constant 3 : index
    %14 = memref.load %arg1[%c3] : memref<7xf32, #tpu.memory_space<smem>>
    %c125_i32 = arith.constant 125 : i32
    %15 = tpu.dynamic_rotate %0 by %c125_i32 dim 1 : vector<8x128xf32>, i32 -> vector<8x128xf32>
    %16 = vector.broadcast %14 : f32 to vector<8x128xf32>
    %17 = arith.mulf %16, %15 : vector<8x128xf32>
    %18 = arith.addf %13, %17 : vector<8x128xf32>
    %c4 = arith.constant 4 : index
    %19 = memref.load %arg1[%c4] : memref<7xf32, #tpu.memory_space<smem>>
    %c124_i32 = arith.constant 124 : i32
    %20 = tpu.dynamic_rotate %0 by %c124_i32 dim 1 : vector<8x128xf32>, i32 -> vector<8x128xf32>
    %21 = vector.broadcast %19 : f32 to vector<8x128xf32>
    %22 = arith.mulf %21, %20 : vector<8x128xf32>
    %23 = arith.addf %18, %22 : vector<8x128xf32>
    %c5 = arith.constant 5 : index
    %24 = memref.load %arg1[%c5] : memref<7xf32, #tpu.memory_space<smem>>
    %25 = vector.broadcast %24 : f32 to vector<8x128xf32>
    %26 = arith.addf %23, %25 : vector<8x128xf32>
    %cst = arith.constant 0.000000e+00 : f32
    %27 = vector.broadcast %cst : f32 to vector<8x128xf32>
    %28 = arith.cmpf oge, %26, %27 : vector<8x128xf32>
    %cst_2 = arith.constant 0.229166672 : f32
    %29 = vector.broadcast %cst_2 : f32 to vector<8x128xf32>
    %30 = arith.mulf %29, %26 : vector<8x128xf32>
    %31 = arith.select %28, %26, %30 : vector<8x128xi1>, vector<8x128xf32>
    %c0_3 = arith.constant 0 : index
    %c0_4 = arith.constant 0 : index
    %32 = vector.load %arg4[%c0_3, %c0_4] : memref<128x16xf32, #tpu.memory_space<vmem>>, vector<128x16xf32>
    %cst_5 = arith.constant dense<0.000000e+00> : vector<8x16xf32>
    %33 = tpu.matmul %31, %32, %cst_5 {dimension_numbers = #tpu.dot_dimension_numbers<[1], [0], [0], [1], [0, 0, 1, 1], [], []>} : vector<8x128xf32>, vector<128x16xf32>, vector<8x16xf32> -> vector<8x16xf32>
    %c0_6 = arith.constant 0 : index
    %c0_7 = arith.constant 0 : index
    %34 = vector.load %arg5[%c0_6, %c0_7] : memref<1x16xf32, #tpu.memory_space<vmem>>, vector<1x16xf32>
    %35 = vector.broadcast %34 : vector<1x16xf32> to vector<8x16xf32>
    %36 = arith.addf %33, %35 : vector<8x16xf32>
    %cst_8 = arith.constant 0.000000e+00 : f32
    %37 = vector.broadcast %cst_8 : f32 to vector<8x16xf32>
    %38 = arith.maximumf %36, %37 : vector<8x16xf32>
    %c0_9 = arith.constant 0 : index
    %c0_10 = arith.constant 0 : index
    %39 = vector.load %arg3[%c0_9, %c0_10] : memref<8x16xf32, #tpu.memory_space<vmem>>, vector<8x16xf32>
    %40 = tpu.concatenate %38, %39 in 1 : vector<8x16xf32>, vector<8x16xf32> -> vector<8x32xf32>
    %c0_11 = arith.constant 0 : index
    %c0_12 = arith.constant 0 : index
    %41 = vector.load %arg6[%c0_11, %c0_12] : memref<32x32xf32, #tpu.memory_space<vmem>>, vector<32x32xf32>
    %cst_13 = arith.constant dense<0.000000e+00> : vector<8x32xf32>
    %42 = tpu.matmul %40, %41, %cst_13 {dimension_numbers = #tpu.dot_dimension_numbers<[1], [0], [0], [1], [0, 0, 1, 1], [], []>} : vector<8x32xf32>, vector<32x32xf32>, vector<8x32xf32> -> vector<8x32xf32>
    %c0_14 = arith.constant 0 : index
    %c0_15 = arith.constant 0 : index
    %43 = vector.load %arg7[%c0_14, %c0_15] : memref<1x32xf32, #tpu.memory_space<vmem>>, vector<1x32xf32>
    %44 = vector.broadcast %43 : vector<1x32xf32> to vector<8x32xf32>
    %45 = arith.addf %42, %44 : vector<8x32xf32>
    %cst_16 = arith.constant 0.000000e+00 : f32
    %46 = vector.broadcast %cst_16 : f32 to vector<8x32xf32>
    %47 = arith.cmpf oge, %45, %46 : vector<8x32xf32>
    %cst_17 = arith.constant 0.229166672 : f32
    %48 = vector.broadcast %cst_17 : f32 to vector<8x32xf32>
    %49 = arith.mulf %48, %45 : vector<8x32xf32>
    %50 = arith.select %47, %45, %49 : vector<8x32xi1>, vector<8x32xf32>
    %c0_18 = arith.constant 0 : index
    %c0_19 = arith.constant 0 : index
    %51 = vector.load %arg8[%c0_18, %c0_19] : memref<1x32xf32, #tpu.memory_space<vmem>>, vector<1x32xf32>
    %cst_20 = arith.constant dense<0.000000e+00> : vector<1x8xf32>
    %52 = tpu.matmul %51, %50, %cst_20 {dimension_numbers = #tpu.dot_dimension_numbers<[1], [1], [0], [0], [0, 0, 1, 0], [], []>} : vector<1x32xf32>, vector<8x32xf32>, vector<1x8xf32> -> vector<1x8xf32>
    %c6 = arith.constant 6 : index
    %53 = memref.load %arg1[%c6] : memref<7xf32, #tpu.memory_space<smem>>
    %54 = vector.broadcast %53 : f32 to vector<1x8xf32>
    %55 = arith.addf %52, %54 : vector<1x8xf32>
    %56 = arith.negf %55 : vector<1x8xf32>
    %57 = math.exp %56 : vector<1x8xf32>
    %cst_21 = arith.constant 1.000000e+00 : f32
    %58 = vector.broadcast %cst_21 : f32 to vector<1x8xf32>
    %59 = arith.addf %58, %57 : vector<1x8xf32>
    %60 = arith.divf %58, %59 : vector<1x8xf32>
    %c0_22 = arith.constant 0 : index
    %c0_23 = arith.constant 0 : index
    %61 = vector.load %arg9[%c0_22, %c0_23] : memref<1x8xf32, #tpu.memory_space<vmem>>, vector<1x8xf32>
    tpu.vector_store %arg9[%c0_22, %c0_23], %60 {strides = array<i32>} : memref<1x8xf32, #tpu.memory_space<vmem>>, vector<1x8xf32>,
    return
  }
  func.func @transform_0(%arg0: i32) -> i32 {
    %c0_i32 = arith.constant 0 : i32
    %c0_i32_0 = arith.constant 0 : i32
    return %c0_i32 : i32
  }
  func.func @transform_1(%arg0: i32) -> (i32, i32) {
    %c0_i32 = arith.constant 0 : i32
    %c0_i32_0 = arith.constant 0 : i32
    return %arg0, %c0_i32 : i32, i32
  }
  func.func @transform_2(%arg0: i32) -> (i32, i32) {
    %c0_i32 = arith.constant 0 : i32
    %c0_i32_0 = arith.constant 0 : i32
    return %arg0, %c0_i32 : i32, i32
  }
  func.func @transform_3(%arg0: i32) -> (i32, i32) {
    %c0_i32 = arith.constant 0 : i32
    %c0_i32_0 = arith.constant 0 : i32
    %c0_i32_1 = arith.constant 0 : i32
    return %c0_i32, %c0_i32_0 : i32, i32
  }
  func.func @transform_4(%arg0: i32) -> (i32, i32) {
    %c0_i32 = arith.constant 0 : i32
    %c0_i32_0 = arith.constant 0 : i32
    %c0_i32_1 = arith.constant 0 : i32
    return %c0_i32, %c0_i32_0 : i32, i32
  }
  func.func @transform_5(%arg0: i32) -> (i32, i32) {
    %c0_i32 = arith.constant 0 : i32
    %c0_i32_0 = arith.constant 0 : i32
    %c0_i32_1 = arith.constant 0 : i32
    return %c0_i32, %c0_i32_0 : i32, i32
  }
  func.func @transform_6(%arg0: i32) -> (i32, i32) {
    %c0_i32 = arith.constant 0 : i32
    %c0_i32_0 = arith.constant 0 : i32
    %c0_i32_1 = arith.constant 0 : i32
    return %c0_i32, %c0_i32_0 : i32, i32
  }
  func.func @transform_7(%arg0: i32) -> (i32, i32) {
    %c0_i32 = arith.constant 0 : i32
    %c0_i32_0 = arith.constant 0 : i32
    %c0_i32_1 = arith.constant 0 : i32
    return %c0_i32, %c0_i32_0 : i32, i32
  }
  func.func @transform_8(%arg0: i32) -> (i32, i32) {
    %c0_i32 = arith.constant 0 : i32
    %c0_i32_0 = arith.constant 0 : i32
    return %c0_i32, %arg0 : i32, i32
  }
}

</mosaic_0001>

<llo_original>
// kernel: radiomics_forward.1
$region0: #{radiomics_forward.1}
  #allocation0 [shape = 'u32[]', space=smem, size = 0x4, offset = 0x4, fixed_abs, tag = 'smem constant byte address 0x4 - core index']
  #allocation1 [shape = 'u32[144,128]{1,0:T(1,128)}', space=vmem, size = 0x12000, scoped, tag = 'internal scratch']
  %s0 = inlined_call_operand.vmem [shape: f32[7], index: 0, kind: input, shape index: {}]
  %s1 = inlined_call_operand.vmem [shape: f32[8,128], index: 1, kind: input, shape index: {}]
  %s2 = inlined_call_operand.vmem [shape: f32[8,16], index: 2, kind: input, shape index: {}]
  %s3 = inlined_call_operand.vmem [shape: f32[128,16], index: 3, kind: input, shape index: {}]
  %s4 = inlined_call_operand.vmem [shape: f32[1,16], index: 4, kind: input, shape index: {}]
  %s5 = inlined_call_operand.vmem [shape: f32[32,32], index: 5, kind: input, shape index: {}]
  %s6 = inlined_call_operand.vmem [shape: f32[1,32], index: 6, kind: input, shape index: {}]
  %s7 = inlined_call_operand.vmem [shape: f32[1,32], index: 7, kind: input, shape index: {}]
  %s8 = inlined_call_operand.hbm [shape: f32[1,8], index: 8, kind: output, shape index: {}]
  %s9 = sld [smem:[#allocation0]]
  $region46: #{radiomics_forward.1} parent=0
    _
  %s11 = ssub.s32 1, %s9
  %s12 = scalar_select 0, %s11, %s9
  $region1: #{radiomics_forward.1} parent=0
    #allocation2 [shape = 'u8[512]{0}', space=smem, size = 0x200, scoped, tag = 'input window, operand 0, single buffered']
    #allocation3 [shape = 's32[1]{0}', space=sflag, size = 0x4, scoped, tag = 'scoped memory for radiomics_forward.1']
    #allocation4 [shape = 's32[1]{0}', space=sflag, size = 0x4, scoped, tag = 'scoped memory for radiomics_forward.1']
    #allocation5 [shape = 'u8[512]{0}', space=vmem, size = 0x400, scoped, tag = 'output window, operand 0, single buffered']
    %13 = vsyncpa [#allocation4], 0
    %14 = vsyncpa [#allocation3], 0
    // Predicated region
    $region2: #{radiomics_forward.1} parent=1 // pred_check
      _
    $region3: #{radiomics_forward.1} parent=1 // pred_check_branch
      %16 = sbr.rel (0) target = $region5
    $region4: #{radiomics_forward.1} parent=1 // pred_region
      %s18 = ssub.s32 16, 16
      %19 = vsyncadd [#allocation4], %s18
      %s21 = sshll.u32 %s0, 4
      %s22 = int_to_ptr.vmem [resolvable:$true] %s21
      %24 = dma.vmem_to_smem %s22, 16, [#allocation2], [#allocation4]
    $region5: #{radiomics_forward.1} parent=1 // pred_fallthru
      _
    // Predicated region
    $region6: #{radiomics_forward.1} parent=1 // pred_check
      _
    $region7: #{radiomics_forward.1} parent=1 // pred_check_branch
      %26 = sbr.rel (0) target = $region9
    $region8: #{radiomics_forward.1} parent=1 // pred_region
      _
    $region9: #{radiomics_forward.1} parent=1 // pred_fallthru
      _
    // Predicated region
    $region10: #{radiomics_forward.1} parent=1 // pred_check
      _
    $region11: #{radiomics_forward.1} parent=1 // pred_check_branch
      %28 = sbr.rel (0) target = $region13
    $region12: #{radiomics_forward.1} parent=1 // pred_region
      _
    $region13: #{radiomics_forward.1} parent=1 // pred_fallthru
      _
    // Predicated region
    $region14: #{radiomics_forward.1} parent=1 // pred_check
      _
    $region15: #{radiomics_forward.1} parent=1 // pred_check_branch
      %30 = sbr.rel (0) target = $region17
    $region16: #{radiomics_forward.1} parent=1 // pred_region
      _
    $region17: #{radiomics_forward.1} parent=1 // pred_fallthru
      _
    // Predicated region
    $region18: #{radiomics_forward.1} parent=1 // pred_check
      _
    $region19: #{radiomics_forward.1} parent=1 // pred_check_branch
      %32 = sbr.rel (0) target = $region21
    $region20: #{radiomics_forward.1} parent=1 // pred_region
      _
    $region21: #{radiomics_forward.1} parent=1 // pred_fallthru
      _
    // Predicated region
    $region22: #{radiomics_forward.1} parent=1 // pred_check
      _
    $region23: #{radiomics_forward.1} parent=1 // pred_check_branch
      %34 = sbr.rel (0) target = $region25
    $region24: #{radiomics_forward.1} parent=1 // pred_region
      _
    $region25: #{radiomics_forward.1} parent=1 // pred_fallthru
      _
    // Predicated region
    $region26: #{radiomics_forward.1} parent=1 // pred_check
      _
    $region27: #{radiomics_forward.1} parent=1 // pred_check_branch
      %36 = sbr.rel (0) target = $region29
    $region28: #{radiomics_forward.1} parent=1 // pred_region
      _
    $region29: #{radiomics_forward.1} parent=1 // pred_fallthru
      _
    // Predicated region
    $region30: #{radiomics_forward.1} parent=1 // pred_check
      _
    $region31: #{radiomics_forward.1} parent=1 // pred_check_branch
      %38 = sbr.rel (0) target = $region33
    $region32: #{radiomics_forward.1} parent=1 // pred_region
      _
    $region33: #{radiomics_forward.1} parent=1 // pred_fallthru
      _
    // Predicated region
    $region34: #{radiomics_forward.1} parent=1 // pred_check
      _
    $region35: #{radiomics_forward.1} parent=1 // pred_check_branch
      %40 = sbr.rel (0) target = $region37
    $region36: #{radiomics_forward.1} parent=1 // pred_region
      %41 = dma.done [#allocation4], 16
    $region37: #{radiomics_forward.1} parent=1 // pred_fallthru
      _
    %42 = sfence
    %v43 = vld [vmem:[%s1] sm:$0xff]
    %s44 = sld [smem:[#allocation2]]
    %v45 = vstv %s44
    %v46 = vmul.f32 %v45, %v43
    %s47 = sld [smem:[#allocation2 + $0x1]]
    %48 = vrot.lane.b32.xlu0 %v43, 127
    %v49 = vpop.permute.xlu0 %48
    %v50 = vstv %s47
    %v51 = vmul.f32 %v50, %v49
    %v52 = vadd.f32 %v46, %v51
    %s53 = sld [smem:[#allocation2 + $0x2]]
    %54 = vrot.lane.b32.xlu0 %v43, 126
    %v55 = vpop.permute.xlu0 %54
    %v56 = vstv %s53
    %v57 = vmul.f32 %v56, %v55
    %v58 = vadd.f32 %v52, %v57
    %s59 = sld [smem:[#allocation2 + $0x3]]
    %60 = vrot.lane.b32.xlu0 %v43, 125
    %v61 = vpop.permute.xlu0 %60
    %v62 = vstv %s59
    %v63 = vmul.f32 %v62, %v61
    %v64 = vadd.f32 %v58, %v63
    %s65 = sld [smem:[#allocation2 + $0x4]]
    %66 = vrot.lane.b32.xlu0 %v43, 124
    %v67 = vpop.permute.xlu0 %66
    %v68 = vstv %s65
    %v69 = vmul.f32 %v68, %v67
    %v70 = vadd.f32 %v64, %v69
    %s71 = sld [smem:[#allocation2 + $0x5]]
    %v72 = vstv %s71
    %v73 = vadd.f32 %v70, %v72
    %vm74 = vcmp.ge.f32.partialorder %v73, 0.0
    %v75 = vmul.f32 %v73, 0.22916667
    %v76 = vsel %vm74, %v73, %v75
    %v77 = vld [vmem:[%s3] sm:$0xff]
    %v78 = vld [vmem:[%s3 + $0x8] sm:$0xff]
    %v79 = vld [vmem:[%s3 + $0x10] sm:$0xff]
    %v80 = vld [vmem:[%s3 + $0x18] sm:$0xff]
    %v81 = vld [vmem:[%s3 + $0x20] sm:$0xff]
    %v82 = vld [vmem:[%s3 + $0x28] sm:$0xff]
    %v83 = vld [vmem:[%s3 + $0x30] sm:$0xff]
    %v84 = vld [vmem:[%s3 + $0x38] sm:$0xff]
    %v85 = vld [vmem:[%s3 + $0x40] sm:$0xff]
    %v86 = vld [vmem:[%s3 + $0x48] sm:$0xff]
    %v87 = vld [vmem:[%s3 + $0x50] sm:$0xff]
    %v88 = vld [vmem:[%s3 + $0x58] sm:$0xff]
    %v89 = vld [vmem:[%s3 + $0x60] sm:$0xff]
    %v90 = vld [vmem:[%s3 + $0x68] sm:$0xff]
    %v91 = vld [vmem:[%s3 + $0x70] sm:$0xff]
    %v92 = vld [vmem:[%s3 + $0x78] sm:$0xff]
    %v93 = vld [vmem:[%s4] sm:$0x1]
    %v95 = vlaneseq
    %v96 = vshrl.u32 %v95, 7
    %v97 = vsub.s32 0, %v96
    %v98 = vrot.slane %v93, %v97
    %100 = vmatprep.subr.mxu0 0.0
    %101 = vmatpush1.msra.mxu0 %v77
    %102 = vmatprep.subr.mxu0 0.0
    %103 = vmatpush1.msra.mxu0 %v78
    %104 = vmatprep.subr.mxu0 0.0
    %105 = vmatpush1.msra.mxu0 %v79
    %106 = vmatprep.subr.mxu0 0.0
    %107 = vmatpush1.msra.mxu0 %v80
    %108 = vmatprep.subr.mxu0 0.0
    %109 = vmatpush1.msra.mxu0 %v81
    %110 = vmatprep.subr.mxu0 0.0
    %111 = vmatpush1.msra.mxu0 %v82
    %112 = vmatprep.subr.mxu0 0.0
    %113 = vmatpush1.msra.mxu0 %v83
    %114 = vmatprep.subr.mxu0 0.0
    %115 = vmatpush1.msra.mxu0 %v84
    %116 = vmatprep.subr.mxu0 0.0
    %117 = vmatpush1.msra.mxu0 %v85
    %118 = vmatprep.subr.mxu0 0.0
    %119 = vmatpush1.msra.mxu0 %v86
    %120 = vmatprep.subr.mxu0 0.0
    %121 = vmatpush1.msra.mxu0 %v87
    %122 = vmatprep.subr.mxu0 0.0
    %123 = vmatpush1.msra.mxu0 %v88
    %124 = vmatprep.subr.mxu0 0.0
    %125 = vmatpush1.msra.mxu0 %v89
    %126 = vmatprep.subr.mxu0 0.0
    %127 = vmatpush1.msra.mxu0 %v90
    %128 = vmatprep.subr.mxu0 0.0
    %129 = vmatpush1.msra.mxu0 %v91
    %130 = vmatprep.subr.mxu0 0.0
    %131 = vmatpush1.msra.mxu0 %v92
    %132 = vmatprep.subr.mxu0 0.0
    %133 = vmatpush1.msra.mxu0 0.0
    %134 = vmatprep.subr.mxu0 0.0
    %135 = vmatpush1.msra.mxu0 0.0
    %136 = vmatprep.subr.mxu0 0.0
    %137 = vmatpush1.msra.mxu0 0.0
    %138 = vmatprep.subr.mxu0 0.0
    %139 = vmatpush1.msra.mxu0 0.0
    %140 = vmatprep.subr.mxu0 0.0
    %141 = vmatpush1.msra.mxu0 0.0
    %142 = vmatprep.subr.mxu0 0.0
    %143 = vmatpush1.msra.mxu0 0.0
    %144 = vmatprep.subr.mxu0 0.0
    %145 = vmatpush1.msra.mxu0 0.0
    %146 = vmatprep.subr.mxu0 0.0
    %147 = vmatpush1.msra.mxu0 0.0
    %148 = vmatprep.subr.mxu0 0.0
    %149 = vmatpush1.msra.mxu0 0.0
    %150 = vmatprep.subr.mxu0 0.0
    %151 = vmatpush1.msra.mxu0 0.0
    %152 = vmatprep.subr.mxu0 0.0
    %153 = vmatpush1.msra.mxu0 0.0
    %154 = vmatprep.subr.mxu0 0.0
    %155 = vmatpush1.msra.mxu0 0.0
    %156 = vmatprep.subr.mxu0 0.0
    %157 = vmatpush1.msra.mxu0 0.0
    %158 = vmatprep.subr.mxu0 0.0
    %159 = vmatpush1.msra.mxu0 0.0
    %160 = vmatprep.subr.mxu0 0.0
    %161 = vmatpush1.msra.mxu0 0.0
    %162 = vmatprep.subr.mxu0 0.0
    %163 = vmatpush1.msra.mxu0 0.0
    %164 = vmatprep.mubr.f32.mxu0 0.0
    %165 = vmatmul.mubr.f32.gmra.mrb[0].mxu0 %v76
    %v166 = vpop.f32.mrb[0].mxu0
    %v167 = vadd.f32 %v98, %v166
    %v168 = vpop.f32.mrb[0].mxu0
    %169 = vdwg.mxu0
    %v170 = vmax.f32 %v167, 0.0
    %v171 = vld [vmem:[%s2] sm:$0xff]
    %173 = vrot.lane.b32.xlu0 %v171, 16
    %v174 = vpop.permute.xlu0 %173
    %vm176 = vcmask 130048
    %v177 = vsel %vm176, %v170, %v174
    %v178 = vld [vmem:[%s5] sm:$0xff]
    %v179 = vld [vmem:[%s5 + $0x8] sm:$0xff]
    %v180 = vld [vmem:[%s5 + $0x10] sm:$0xff]
    %v181 = vld [vmem:[%s5 + $0x18] sm:$0xff]
    %v182 = vld [vmem:[%s6] sm:$0x1]
    %v184 = vlaneseq
    %v185 = vshrl.u32 %v184, 7
    %v186 = vsub.s32 0, %v185
    %v187 = vrot.slane %v182, %v186
    %vm189 = vcmask 261120
    %v191 = vsel %vm189, %v177, 0
    %193 = vmatprep.subr.mxu0 0.0
    %194 = vmatpush1.msra.mxu0 %v178
    %195 = vmatprep.subr.mxu0 0.0
    %196 = vmatpush1.msra.mxu0 %v179
    %197 = vmatprep.subr.mxu0 0.0
    %198 = vmatpush1.msra.mxu0 %v180
    %199 = vmatprep.subr.mxu0 0.0
    %200 = vmatpush1.msra.mxu0 %v181
    %201 = vmatprep.subr.mxu0 0.0
    %202 = vmatpush1.msra.mxu0 0.0
    %203 = vmatprep.subr.mxu0 0.0
    %204 = vmatpush1.msra.mxu0 0.0
    %205 = vmatprep.subr.mxu0 0.0
    %206 = vmatpush1.msra.mxu0 0.0
    %207 = vmatprep.subr.mxu0 0.0
    %208 = vmatpush1.msra.mxu0 0.0
    %209 = vmatprep.subr.mxu0 0.0
    %210 = vmatpush1.msra.mxu0 0.0
    %211 = vmatprep.subr.mxu0 0.0
    %212 = vmatpush1.msra.mxu0 0.0
    %213 = vmatprep.subr.mxu0 0.0
    %214 = vmatpush1.msra.mxu0 0.0
    %215 = vmatprep.subr.mxu0 0.0
    %216 = vmatpush1.msra.mxu0 0.0
    %217 = vmatprep.subr.mxu0 0.0
    %218 = vmatpush1.msra.mxu0 0.0
    %219 = vmatprep.subr.mxu0 0.0
    %220 = vmatpush1.msra.mxu0 0.0
    %221 = vmatprep.subr.mxu0 0.0
    %222 = vmatpush1.msra.mxu0 0.0
    %223 = vmatprep.subr.mxu0 0.0
    %224 = vmatpush1.msra.mxu0 0.0
    %225 = vmatprep.subr.mxu0 0.0
    %226 = vmatpush1.msra.mxu0 0.0
    %227 = vmatprep.subr.mxu0 0.0
    %228 = vmatpush1.msra.mxu0 0.0
    %229 = vmatprep.subr.mxu0 0.0
    %230 = vmatpush1.msra.mxu0 0.0
    %231 = vmatprep.subr.mxu0 0.0
    %232 = vmatpush1.msra.mxu0 0.0
    %233 = vmatprep.subr.mxu0 0.0
    %234 = vmatpush1.msra.mxu0 0.0
    %235 = vmatprep.subr.mxu0 0.0
    %236 = vmatpush1.msra.mxu0 0.0
    %237 = vmatprep.subr.mxu0 0.0
    %238 = vmatpush1.msra.mxu0 0.0
    %239 = vmatprep.subr.mxu0 0.0
    %240 = vmatpush1.msra.mxu0 0.0
    %241 = vmatprep.subr.mxu0 0.0
    %242 = vmatpush1.msra.mxu0 0.0
    %243 = vmatprep.subr.mxu0 0.0
    %244 = vmatpush1.msra.mxu0 0.0
    %245 = vmatprep.subr.mxu0 0.0
    %246 = vmatpush1.msra.mxu0 0.0
    %247 = vmatprep.subr.mxu0 0.0
    %248 = vmatpush1.msra.mxu0 0.0
    %249 = vmatprep.subr.mxu0 0.0
    %250 = vmatpush1.msra.mxu0 0.0
    %251 = vmatprep.subr.mxu0 0.0
    %252 = vmatpush1.msra.mxu0 0.0
    %253 = vmatprep.subr.mxu0 0.0
    %254 = vmatpush1.msra.mxu0 0.0
    %255 = vmatprep.subr.mxu0 0.0
    %256 = vmatpush1.msra.mxu0 0.0
    %257 = vmatprep.mubr.f32.mxu0 0.0
    %258 = vmatmul.mubr.f32.gmra.mrb[0].mxu0 %v191
    %v259 = vpop.f32.mrb[0].mxu0
    %v260 = vadd.f32 %v187, %v259
    %v261 = vpop.f32.mrb[0].mxu0
    %262 = vdwg.mxu0
    %vm263 = vcmp.ge.f32.partialorder %v260, 0.0
    %v264 = vmul.f32 %v260, 0.22916667
    %v265 = vsel %vm263, %v260, %v264
    %v266 = vld [vmem:[%s7] sm:$0x1]
    %s267 = sld [smem:[#allocation2 + $0x6]]
    %v268 = vstv %s267
    %v270 = vsel %vm189, %v266, 0
    %v273 = vsel %vm189, %v265, 0
    %275 = vmatprep.subr.mxu0 0.0
    %276 = vmatpush1.xpose.msra.mxu0 %v273
    %277 = vmatprep.subr.mxu0 0.0
    %278 = vmatpush1.xpose.msra.mxu0 0.0
    %279 = vmatprep.subr.mxu0 0.0
    %280 = vmatpush1.xpose.msra.mxu0 0.0
    %281 = vmatprep.subr.mxu0 0.0
    %282 = vmatpush1.xpose.msra.mxu0 0.0
    %283 = vmatprep.subr.mxu0 0.0
    %284 = vmatpush1.xpose.msra.mxu0 0.0
    %285 = vmatprep.subr.mxu0 0.0
    %286 = vmatpush1.xpose.msra.mxu0 0.0
    %287 = vmatprep.subr.mxu0 0.0
    %288 = vmatpush1.xpose.msra.mxu0 0.0
    %289 = vmatprep.subr.mxu0 0.0
    %290 = vmatpush1.xpose.msra.mxu0 0.0
    %291 = vmatprep.subr.mxu0 0.0
    %292 = vmatpush1.xpose.msra.mxu0 0.0
    %293 = vmatprep.subr.mxu0 0.0
    %294 = vmatpush1.xpose.msra.mxu0 0.0
    %295 = vmatprep.subr.mxu0 0.0
    %296 = vmatpush1.xpose.msra.mxu0 0.0
    %297 = vmatprep.subr.mxu0 0.0
    %298 = vmatpush1.xpose.msra.mxu0 0.0
    %299 = vmatprep.subr.mxu0 0.0
    %300 = vmatpush1.xpose.msra.mxu0 0.0
    %301 = vmatprep.subr.mxu0 0.0
    %302 = vmatpush1.xpose.msra.mxu0 0.0
    %303 = vmatprep.subr.mxu0 0.0
    %304 = vmatpush1.xpose.msra.mxu0 0.0
    %305 = vmatprep.subr.mxu0 0.0
    %306 = vmatpush1.xpose.msra.mxu0 0.0
    %307 = vmatprep.subr.mxu0 0.0
    %308 = vmatpush1.xpose.msra.mxu0 0.0
    %309 = vmatprep.subr.mxu0 0.0
    %310 = vmatpush1.xpose.msra.mxu0 0.0
    %311 = vmatprep.subr.mxu0 0.0
    %312 = vmatpush1.xpose.msra.mxu0 0.0
    %313 = vmatprep.subr.mxu0 0.0
    %314 = vmatpush1.xpose.msra.mxu0 0.0
    %315 = vmatprep.subr.mxu0 0.0
    %316 = vmatpush1.xpose.msra.mxu0 0.0
    %317 = vmatprep.subr.mxu0 0.0
    %318 = vmatpush1.xpose.msra.mxu0 0.0
    %319 = vmatprep.subr.mxu0 0.0
    %320 = vmatpush1.xpose.msra.mxu0 0.0
    %321 = vmatprep.subr.mxu0 0.0
    %322 = vmatpush1.xpose.msra.mxu0 0.0
    %323 = vmatprep.subr.mxu0 0.0
    %324 = vmatpush1.xpose.msra.mxu0 0.0
    %325 = vmatprep.subr.mxu0 0.0
    %326 = vmatpush1.xpose.msra.mxu0 0.0
    %327 = vmatprep.subr.mxu0 0.0
    %328 = vmatpush1.xpose.msra.mxu0 0.0
    %329 = vmatprep.subr.mxu0 0.0
    %330 = vmatpush1.xpose.msra.mxu0 0.0
    %331 = vmatprep.subr.mxu0 0.0
    %332 = vmatpush1.xpose.msra.mxu0 0.0
    %333 = vmatprep.subr.mxu0 0.0
    %334 = vmatpush1.xpose.msra.mxu0 0.0
    %335 = vmatprep.subr.mxu0 0.0
    %336 = vmatpush1.xpose.msra.mxu0 0.0
    %337 = vmatprep.subr.mxu0 0.0
    %338 = vmatpush1.xpose.msra.mxu0 0.0
    %339 = vmatprep.mubr.f32.mxu0 0.0
    %340 = vmatmul.mubr.f32.gmra.mrb[0].mxu0 %v270
    %v341 = vpop.f32.mrb[0].mxu0
    %v342 = vadd.f32 %v268, %v341
    %v343 = vpop.f32.mrb[0].mxu0
    %344 = vdwg.mxu0
    %v345 = vxor.u32 %v342, 2147483648
    %v346 = vmul.f32 %v345, 1.442695
    %v347 = vpow.pop %v346
    %v348 = vadd.f32 %v347, 1.0
    %v349 = vrcp.pop %v348
    %v350 = vmul.f32 1.0, %v349
    %vm351 = vcmask 57344
    %352 = vst.msk [vmem:[#allocation5] sm:$0x1] %vm351, %v350
    // Predicated region
    $region38: #{radiomics_forward.1} parent=1 // pred_check
      _
    $region39: #{radiomics_forward.1} parent=1 // pred_check_branch
      %354 = sbr.rel (0) target = $region41
    $region40: #{radiomics_forward.1} parent=1 // pred_region
      %s356 = ssub.s32 16, 16
      %357 = vsyncadd [#allocation3], %s356
      %s359 = sshll.u32 [#allocation5], 4
      %s360 = int_to_ptr.vmem [resolvable:$true] %s359
      %362 = dma.vmem_to_hbm [thread:$0]  %s360, 16, %s8, [#allocation3]
    $region41: #{radiomics_forward.1} parent=1 // pred_fallthru
      _
    // Predicated region
    $region42: #{radiomics_forward.1} parent=1 // pred_check
      _
    $region43: #{radiomics_forward.1} parent=1 // pred_check_branch
      %364 = sbr.rel (0) target = $region45
    $region44: #{radiomics_forward.1} parent=1 // pred_region
      %365 = dma.done [#allocation3], 16
    $region45: #{radiomics_forward.1} parent=1 // pred_fallthru
      _
    %366 = vsyncpa [#allocation3], 1
    %367 = vsyncpa [#allocation4], 1

</llo_original>
